<compile_context>
chip_gen: v7x
topology: tpu7x:2x2x1
jax: 0.10.0
libtpu: 0.0.40
codegen_flags: <defaults>
</compile_context>

<pallas_src>
import functools

import jax
import jax.numpy as jnp
from jax import lax
from jax.experimental import pallas as pl
from jax.experimental.pallas import tpu as pltpu

ALPHA = 0.25
GAMMA = 2.0
EPS = 1e-8

_SUBLANE = 16                 # row-tile multiple (covers f32 (8,128) and bf16 (16,128))
_LANE = 128                   # internal VMEM lane width used for footprint estimates
_MIN_BLOCKS_PER_GRID = 8      # keep >= 8 row blocks for large N (feeds both v7x TCs)


def _round_up(x, m):
    return ((x + m - 1) // m) * m


def _round_down(x, m):
    return (x // m) * m


def focal_loss_kernel(logits_ref, target_ref, out_ref, *, alpha, gamma):
    """One (block_rows, C) strip of the elementwise focal loss."""
    i = pl.program_id(0)
    block_rows, num_cols = logits_ref.shape

    x = logits_ref[...].astype(jnp.float32)
    t = target_ref[...].astype(jnp.float32)

    # numerically stable softmax over the class (lane) axis
    m = jnp.max(x, axis=-1, keepdims=True)
    e = jnp.exp(x - m)
    denom = jnp.sum(e, axis=-1, keepdims=True)
    # exact reciprocal keeps probs <= 1, so log(1 - probs + EPS) never sees a negative arg
    probs = e * pl.reciprocal(denom, approx=False)

    one = jnp.float32(1.0)
    q = one - probs

    # focal modulation: avoid float-exponent jnp.power (lowers to exp+log on the one EUP slot)
    g = float(gamma)
    if g == 2.0:
        p_g = probs * probs
        q_g = q * q
    elif g.is_integer() and g >= 0.0:
        p_g = probs ** int(g)
        q_g = q ** int(g)
    else:
        p_g = jnp.power(probs, jnp.float32(g))
        q_g = jnp.power(q, jnp.float32(g))

    # Full-width logs are kept (no log-softmax rewrite) to match torch's
    # log(probs + 1e-8) / log(1 - probs + 1e-8) semantics exactly; the kernel is
    # HBM-bound with EUP slack on v5e/v6e/v7x, so this costs no wall time.
    base = q_g * t * jnp.log(probs + EPS) + p_g * (one - t) * jnp.log(q + EPS)

    # weight == 1 everywhere except the main diagonal (row == col), where it is alpha.
    # Only blocks whose global row range intersects [0, num_cols) can hold diagonal cells.
    diag_in_block = i * block_rows < num_cols

    @pl.when(diag_in_block)
    def _():
        rows = lax.broadcasted_iota(jnp.int32, base.shape, 0) + i * block_rows
        cols = lax.broadcasted_iota(jnp.int32, base.shape, 1)
        w = jnp.where(rows == cols, jnp.float32(alpha), one)
        out_ref[...] = (-(w * base)).astype(out_ref.dtype)

    @pl.when(jnp.logical_not(diag_in_block))
    def _():
        out_ref[...] = (-base).astype(out_ref.dtype)


def _vmem_budgets():
    """Return (row-tile VMEM budget, vmem_limit cap) in bytes, per chip generation."""
    try:
        info = pltpu.get_tpu_info()
        cap_phys = int(getattr(info, "vmem_capacity_bytes", 64 << 20))
    except Exception:
        cap_phys = 64 << 20          # unknown -> assume the smallest (v7x-like) VMEM
    if cap_phys <= (64 << 20):       # v7x: 64 MiB physical per TensorCore
        return 24 << 20, 40 << 20
    return 56 << 20, 96 << 20        # v5e / v6e: 128 MiB physical


def focal_loss(logits, target, *, alpha=ALPHA, gamma=GAMMA, block_rows=512):
    assert logits.shape == target.shape and logits.ndim == 2
    n, c = logits.shape
    out_dtype = logits.dtype

    c_lanes = _round_up(c, _LANE)    # internal VMEM lane footprint of one row
    in_itemsize = jnp.dtype(logits.dtype).itemsize + jnp.dtype(target.dtype).itemsize
    out_itemsize = jnp.dtype(out_dtype).itemsize

    # VMEM cost of one tile row: double-buffered I/O + ~6 live f32 intermediates
    per_row_io = 2 * c_lanes * (in_itemsize + out_itemsize)
    per_row_f32 = 6 * c_lanes * 4
    budget, vmem_cap = _vmem_budgets()

    # Row tile: as big as the per-chip VMEM budget allows (kernel is HBM-bandwidth
    # bound -> big tiles amortize the ~0.35 us/step grid overhead) ...
    max_rows = max(_SUBLANE, budget // (per_row_io + per_row_f32))
    br = int(min(block_rows, max_rows))
    # ... but capped so large-N problems still produce >= ~8 grid blocks, keeping both
    # v7x TensorCores busy under dimension_semantics=("parallel",).
    if n >= _MIN_BLOCKS_PER_GRID * _SUBLANE:
        br = min(br, max(_SUBLANE, n // _MIN_BLOCKS_PER_GRID))
    br = max(_SUBLANE, _round_down(br, _SUBLANE))
    br = min(br, _round_up(n, _SUBLANE))

    grid = (pl.cdiv(n, br),)

    # scoped-VMEM limit sized off the f32 compute footprint (not just I/O itemsize),
    # with headroom for Mosaic's internal scratch; capped per chip generation.
    vmem_limit = int(min(max(br * (per_row_io + per_row_f32) + (4 << 20), 16 << 20),
                         vmem_cap))

    kernel = functools.partial(focal_loss_kernel, alpha=alpha, gamma=gamma)

    # Ragged shapes handled natively (no jnp.pad / slicing HBM round-trips):
    #   rows:    partial last block -> OOB writes dropped, garbage rows stay isolated
    #            because the softmax reduction is strictly per-row
    #   classes: block last dim equals the true c (allowed by the (8,128) rule), so only
    #            the tail vreg per row strip uses a masked store
    return pl.pallas_call(
        kernel,
        out_shape=jax.ShapeDtypeStruct((n, c), out_dtype),
        grid_spec=pltpu.PrefetchScalarGridSpec(
            num_scalar_prefetch=0,
            grid=grid,
            in_specs=[
                pl.BlockSpec((br, c), lambda i: (i, 0)),
                pl.BlockSpec((br, c), lambda i: (i, 0)),
            ],
            out_specs=pl.BlockSpec((br, c), lambda i: (i, 0)),
        ),
        compiler_params=pltpu.CompilerParams(
            dimension_semantics=("parallel",),
            vmem_limit_bytes=vmem_limit,
        ),
    )(logits, target)


def focal_loss_ref(logits, target, alpha=ALPHA, gamma=GAMMA):
    # pure-JAX reference mirroring the PyTorch forward
    probs = jax.nn.softmax(logits.astype(jnp.float32), axis=-1)
    n, c = logits.shape
    row = jnp.arange(n)[:, None]
    col = jnp.arange(c)[None, :]
    weight = jnp.where(row == col, alpha, 1.0).astype(jnp.float32)
    t = target.astype(jnp.float32)
    loss = -weight * (1.0 - probs) ** gamma * t * jnp.log(probs + EPS)
    loss = loss - weight * probs ** gamma * (1.0 - t) * jnp.log(1.0 - probs + EPS)
    return loss.astype(logits.dtype)


if __name__ == "__main__":
    key = jax.random.PRNGKey(0)
    ks = jax.random.split(key, 8)

    # case 1: aligned small shape (16 samples x 128 classes), f32
    N, C = 16, 128
    logits = jax.random.normal(ks[0], (N, C), dtype=jnp.float32)
    target = jax.random.uniform(ks[1], (N, C), dtype=jnp.float32)   # soft targets in [0,1]
    out = jax.block_until_ready(focal_loss(logits, target))
    ref = focal_loss_ref(logits, target)
    assert out.shape == logits.shape and out.dtype == logits.dtype
    assert jnp.allclose(out, ref, atol=1e-5, rtol=1e-5), "mismatch vs reference (aligned f32)"

    # case 2: ragged shape (partial last row block + classes not a multiple of 128)
    N2, C2 = 13, 100
    logits2 = jax.random.normal(ks[2], (N2, C2), dtype=jnp.float32)
    target2 = jax.random.uniform(ks[3], (N2, C2), dtype=jnp.float32)
    out2 = jax.block_until_ready(focal_loss(logits2, target2))
    ref2 = focal_loss_ref(logits2, target2)
    assert out2.shape == logits2.shape and out2.dtype == logits2.dtype
    assert jnp.allclose(out2, ref2, atol=1e-5, rtol=1e-5), "mismatch vs reference (ragged f32)"

    # case 3: N > C with multiple row blocks (exercises the no-diagonal kernel branch)
    N3, C3 = 48, 16
    logits3 = jax.random.normal(ks[4], (N3, C3), dtype=jnp.float32)
    target3 = jax.random.uniform(ks[5], (N3, C3), dtype=jnp.float32)
    out3 = jax.block_until_ready(focal_loss(logits3, target3, block_rows=16))
    ref3 = focal_loss_ref(logits3, target3)
    assert jnp.allclose(out3, ref3, atol=1e-5, rtol=1e-5), "mismatch vs reference (multi-block f32)"

    # case 4: bf16 I/O fast path (halves bytes/element for this HBM-bound kernel)
    N4, C4 = 24, 160
    logits4 = jax.random.normal(ks[6], (N4, C4), dtype=jnp.bfloat16)
    target4 = jax.random.uniform(ks[7], (N4, C4), dtype=jnp.bfloat16)
    out4 = jax.block_until_ready(focal_loss(logits4, target4))
    ref4 = focal_loss_ref(logits4, target4)
    assert out4.shape == logits4.shape and out4.dtype == jnp.bfloat16
    assert jnp.allclose(out4.astype(jnp.float32), ref4.astype(jnp.float32),
                        atol=5e-2, rtol=5e-2), "mismatch vs reference (bf16)"

    print("KERNEL_OK")
</pallas_src>

<mosaic_0001>
module attributes {stable_mosaic.version = 11 : i64} {
  func.func @focal_loss_kernel(%arg0: i32, %arg1: memref<16x128xf32, #tpu.memory_space<vmem>>, %arg2: memref<16x128xf32, #tpu.memory_space<vmem>>, %arg3: memref<16x128xf32, #tpu.memory_space<vmem>>) attributes {dimension_semantics = [#tpu.dimension_semantics<parallel>], iteration_bounds = array<i64: 1>, scalar_prefetch = 0 : i64, scratch_operands = 0 : i64, tpu.core_type = #tpu.core_type<tc>, window_params = [{transform_indices = @transform_0, window_bounds = array<i64: 16, 128>}, {transform_indices = @transform_1, window_bounds = array<i64: 16, 128>}, {transform_indices = @transform_2, window_bounds = array<i64: 16, 128>}]} {
    %c0 = arith.constant 0 : index
    %c0_0 = arith.constant 0 : index
    %0 = vector.load %arg1[%c0, %c0_0] : memref<16x128xf32, #tpu.memory_space<vmem>>, vector<16x128xf32>
    %c0_1 = arith.constant 0 : index
    %c0_2 = arith.constant 0 : index
    %1 = vector.load %arg2[%c0_1, %c0_2] : memref<16x128xf32, #tpu.memory_space<vmem>>, vector<16x128xf32>
    %cst = arith.constant dense<0xFF800000> : vector<16xf32>
    %2 = vector.multi_reduction <maximumf>, %0, %cst [1] : vector<16x128xf32> to vector<16xf32>
    %3 = vector.shape_cast %2 : vector<16xf32> to vector<16x1xf32>
    %4 = vector.broadcast %3 : vector<16x1xf32> to vector<16x128xf32>
    %5 = arith.subf %0, %4 : vector<16x128xf32>
    %6 = math.exp %5 : vector<16x128xf32>
    %cst_3 = arith.constant dense<0.000000e+00> : vector<16xf32>
    %7 = vector.multi_reduction <add>, %6, %cst_3 [1] : vector<16x128xf32> to vector<16xf32>
    %8 = vector.shape_cast %7 : vector<16xf32> to vector<16x1xf32>
    %9 = tpu.reciprocal %8 : vector<16x1xf32> -> vector<16x1xf32>
    %10 = vector.broadcast %9 : vector<16x1xf32> to vector<16x128xf32>
    %11 = arith.mulf %6, %10 : vector<16x128xf32>
    %cst_4 = arith.constant 1.000000e+00 : f32
    %12 = vector.broadcast %cst_4 : f32 to vector<16x128xf32>
    %13 = arith.subf %12, %11 : vector<16x128xf32>
    %14 = arith.mulf %11, %11 : vector<16x128xf32>
    %15 = arith.mulf %13, %13 : vector<16x128xf32>
    %16 = arith.mulf %15, %1 : vector<16x128xf32>
    %cst_5 = arith.constant 9.99999993E-9 : f32
    %17 = vector.broadcast %cst_5 : f32 to vector<16x128xf32>
    %18 = arith.addf %11, %17 : vector<16x128xf32>
    %19 = math.log %18 : vector<16x128xf32>
    %20 = arith.mulf %16, %19 : vector<16x128xf32>
    %cst_6 = arith.constant 1.000000e+00 : f32
    %21 = vector.broadcast %cst_6 : f32 to vector<16x128xf32>
    %22 = arith.subf %21, %1 : vector<16x128xf32>
    %23 = arith.mulf %14, %22 : vector<16x128xf32>
    %cst_7 = arith.constant 9.99999993E-9 : f32
    %24 = vector.broadcast %cst_7 : f32 to vector<16x128xf32>
    %25 = arith.addf %13, %24 : vector<16x128xf32>
    %26 = math.log %25 : vector<16x128xf32>
    %27 = arith.mulf %23, %26 : vector<16x128xf32>
    %28 = arith.addf %20, %27 : vector<16x128xf32>
    %c16_i32 = arith.constant 16 : i32
    %29 = arith.muli %arg0, %c16_i32 : i32
    %c128_i32 = arith.constant 128 : i32
    %30 = arith.cmpi slt, %29, %c128_i32 : i32
    %31 = arith.extui %30 : i1 to i32
    %cst_8 = arith.constant 1.000000e+00 : f32
    %c0_i32 = arith.constant 0 : i32
    %32 = arith.cmpi ne, %31, %c0_i32 : i32
    scf.if %32 {
      %36 = tpu.iota {dimensions = array<i32: 0>} : vector<16x128xi32>
      %c16_i32_10 = arith.constant 16 : i32
      %37 = arith.muli %arg0, %c16_i32_10 : i32
      %38 = vector.broadcast %37 : i32 to vector<16x128xi32>
      %39 = arith.addi %36, %38 : vector<16x128xi32>
      %40 = tpu.iota {dimensions = array<i32: 1>} : vector<16x128xi32>
      %41 = arith.cmpi eq, %39, %40 : vector<16x128xi32>
      %cst_11 = arith.constant 2.500000e-01 : f32
      %42 = vector.broadcast %cst_11 : f32 to vector<16x128xf32>
      %43 = vector.broadcast %cst_8 : f32 to vector<16x128xf32>
      %44 = arith.select %41, %42, %43 : vector<16x128xi1>, vector<16x128xf32>
      %45 = arith.mulf %44, %28 : vector<16x128xf32>
      %cst_12 = arith.constant 0.000000e+00 : f32
      %46 = vector.broadcast %cst_12 : f32 to vector<16x128xf32>
      %47 = arith.subf %46, %45 : vector<16x128xf32>
      %c0_13 = arith.constant 0 : index
      %c0_14 = arith.constant 0 : index
      %48 = vector.load %arg3[%c0_13, %c0_14] : memref<16x128xf32, #tpu.memory_space<vmem>>, vector<16x128xf32>
      tpu.vector_store %arg3[%c0_13, %c0_14], %47 {strides = array<i32>} : memref<16x128xf32, #tpu.memory_space<vmem>>, vector<16x128xf32>,
    } else {
    }
    %true = arith.constant true
    %33 = arith.xori %30, %true : i1
    %34 = arith.extui %33 : i1 to i32
    %c0_i32_9 = arith.constant 0 : i32
    %35 = arith.cmpi ne, %34, %c0_i32_9 : i32
    scf.if %35 {
      %cst_10 = arith.constant 0.000000e+00 : f32
      %36 = vector.broadcast %cst_10 : f32 to vector<16x128xf32>
      %37 = arith.subf %36, %28 : vector<16x128xf32>
      %c0_11 = arith.constant 0 : index
      %c0_12 = arith.constant 0 : index
      %38 = vector.load %arg3[%c0_11, %c0_12] : memref<16x128xf32, #tpu.memory_space<vmem>>, vector<16x128xf32>
      tpu.vector_store %arg3[%c0_11, %c0_12], %37 {strides = array<i32>} : memref<16x128xf32, #tpu.memory_space<vmem>>, vector<16x128xf32>,
    } else {
    }
    return
  }
  func.func @transform_0(%arg0: i32) -> (i32, i32) {
    %c0_i32 = arith.constant 0 : i32
    %c0_i32_0 = arith.constant 0 : i32
    return %arg0, %c0_i32 : i32, i32
  }
  func.func @transform_1(%arg0: i32) -> (i32, i32) {
    %c0_i32 = arith.constant 0 : i32
    %c0_i32_0 = arith.constant 0 : i32
    return %arg0, %c0_i32 : i32, i32
  }
  func.func @transform_2(%arg0: i32) -> (i32, i32) {
    %c0_i32 = arith.constant 0 : i32
    %c0_i32_0 = arith.constant 0 : i32
    return %arg0, %c0_i32 : i32, i32
  }
}

</mosaic_0001>

<llo_original>
// kernel: tpu_custom_call.1
$region0: #{tpu_custom_call.1}
  #allocation0 [shape = 'u32[]', space=smem, size = 0x4, offset = 0x4, fixed_abs, tag = 'smem constant byte address 0x4 - core index']
  #allocation1 [shape = 'u32[144,128]{1,0:T(1,128)}', space=vmem, size = 0x12000, scoped, tag = 'internal scratch']
  %s0 = inlined_call_operand.hbm [shape: f32[16,128], index: 0, kind: input, shape index: {}]
  %s1 = inlined_call_operand.hbm [shape: f32[16,128], index: 1, kind: input, shape index: {}]
  %s2 = inlined_call_operand.hbm [shape: f32[16,128], index: 2, kind: output, shape index: {}]
  %s3 = sld [smem:[#allocation0]]
  $region34: #{tpu_custom_call.1} parent=0
    _
  %s5 = ssub.s32 1, %s3
  %s6 = scalar_select 0, %s5, %s3
  $region1: #{tpu_custom_call.1} parent=0
    #allocation2 [shape = 'u8[8192]{0}', space=vmem, size = 0x2000, scoped, tag = 'input window, operand 0, single buffered']
    #allocation3 [shape = 's32[1]{0}', space=sflag, size = 0x4, scoped, tag = 'scoped memory for tpu_custom_call.1']
    #allocation4 [shape = 's32[1]{0}', space=sflag, size = 0x4, scoped, tag = 'scoped memory for tpu_custom_call.1']
    #allocation5 [shape = 'u8[8192]{0}', space=vmem, size = 0x2000, scoped, tag = 'input window, operand 1, single buffered']
    #allocation6 [shape = 's32[1]{0}', space=sflag, size = 0x4, scoped, tag = 'scoped memory for tpu_custom_call.1']
    #allocation7 [shape = 'u8[8192]{0}', space=vmem, size = 0x2000, scoped, tag = 'output window, operand 0, single buffered']
    %7 = vsyncpa [#allocation3], 0
    %8 = vsyncpa [#allocation6], 0
    %9 = vsyncpa [#allocation4], 0
    // Predicated region
    $region2: #{tpu_custom_call.1} parent=1 // pred_check
      _
    $region3: #{tpu_custom_call.1} parent=1 // pred_check_branch
      %11 = sbr.rel (0) target = $region5
    $region4: #{tpu_custom_call.1} parent=1 // pred_region
      %s13 = ssub.s32 256, 256
      %14 = vsyncadd [#allocation3], %s13
      %s15 = sshll.u32 [#allocation2], 4
      %s16 = int_to_ptr.vmem [resolvable:$true] %s15
      %21 = dma.hbm_to_vmem [thread:$0]  %s0, 256, %s16, [#allocation3], 128, 128, 8
    $region5: #{tpu_custom_call.1} parent=1 // pred_fallthru
      _
    // Predicated region
    $region6: #{tpu_custom_call.1} parent=1 // pred_check
      _
    $region7: #{tpu_custom_call.1} parent=1 // pred_check_branch
      %23 = sbr.rel (0) target = $region9
    $region8: #{tpu_custom_call.1} parent=1 // pred_region
      %s25 = ssub.s32 256, 256
      %26 = vsyncadd [#allocation6], %s25
      %s27 = sshll.u32 [#allocation5], 4
      %s28 = int_to_ptr.vmem [resolvable:$true] %s27
      %33 = dma.hbm_to_vmem [thread:$0]  %s1, 256, %s28, [#allocation6], 128, 128, 8
    $region9: #{tpu_custom_call.1} parent=1 // pred_fallthru
      _
    // Predicated region
    $region10: #{tpu_custom_call.1} parent=1 // pred_check
      _
    $region11: #{tpu_custom_call.1} parent=1 // pred_check_branch
      %35 = sbr.rel (0) target = $region13
    $region12: #{tpu_custom_call.1} parent=1 // pred_region
      %36 = dma.done [#allocation3], 256
    $region13: #{tpu_custom_call.1} parent=1 // pred_fallthru
      _
    // Predicated region
    $region14: #{tpu_custom_call.1} parent=1 // pred_check
      _
    $region15: #{tpu_custom_call.1} parent=1 // pred_check_branch
      %38 = sbr.rel (0) target = $region17
    $region16: #{tpu_custom_call.1} parent=1 // pred_region
      %39 = dma.done [#allocation6], 256
    $region17: #{tpu_custom_call.1} parent=1 // pred_fallthru
      _
    %v40 = vld [vmem:[#allocation2] sm:$0xff]
    %v41 = vld [vmem:[#allocation2 + $0x8] sm:$0xff]
    %v42 = vld [vmem:[#allocation5] sm:$0xff]
    %v43 = vld [vmem:[#allocation5 + $0x8] sm:$0xff]
    %44 = vmax.xlane.f32.xlu0 %v40
    %v45 = vpop.xlane.xlu0 %44
    %46 = vmax.xlane.f32.xlu0 %v41
    %v47 = vpop.xlane.xlu0 %46
    %v48 = vsub.f32 %v40, %v45
    %v49 = vsub.f32 %v41, %v47
    %v50 = vmul.f32 %v48, 1.442695
    %v51 = vpow.pop %v50
    %v52 = vmul.f32 %v49, 1.442695
    %v53 = vpow.pop %v52
    %54 = vadd.xlane.f32.xlu0 %v51
    %v55 = vpop.xlane.xlu0 %54
    %56 = vadd.xlane.f32.xlu0 %v53
    %v57 = vpop.xlane.xlu0 %56
    %v58 = vrcp.pop %v55
    %v59 = vrcp.pop %v57
    %v60 = vmul.f32 %v51, %v58
    %v61 = vmul.f32 %v53, %v59
    %v62 = vsub.f32 1.0, %v60
    %v63 = vsub.f32 1.0, %v61
    %v64 = vmul.f32 %v60, %v60
    %v65 = vmul.f32 %v61, %v61
    %v66 = vmul.f32 %v62, %v62
    %v67 = vmul.f32 %v63, %v63
    %v68 = vmul.f32 %v66, %v42
    %v69 = vmul.f32 %v67, %v43
    %v70 = vadd.f32 %v60, 1e-08
    %v71 = vadd.f32 %v61, 1e-08
    %v72 = vlog2.pop %v70
    %v73 = vmul.f32 %v72, 0.6931472
    %v74 = vlog2.pop %v71
    %v75 = vmul.f32 %v74, 0.6931472
    %v76 = vmul.f32 %v68, %v73
    %v77 = vmul.f32 %v69, %v75
    %v78 = vsub.f32 1.0, %v42
    %v79 = vsub.f32 1.0, %v43
    %v80 = vmul.f32 %v64, %v78
    %v81 = vmul.f32 %v65, %v79
    %v82 = vadd.f32 %v62, 1e-08
    %v83 = vadd.f32 %v63, 1e-08
    %v84 = vlog2.pop %v82
    %v85 = vmul.f32 %v84, 0.6931472
    %v86 = vlog2.pop %v83
    %v87 = vmul.f32 %v86, 0.6931472
    %v88 = vmul.f32 %v80, %v85
    %v89 = vmul.f32 %v81, %v87
    %v90 = vadd.f32 %v76, %v88
    %v91 = vadd.f32 %v77, %v89
    %s92 = smul.u32 0, 16
    %p93 = scmp.lt.s32.totalorder %s92, 128
    // Predicated region
    $region18: #{tpu_custom_call.1} parent=1 // pred_check
      %p94 = pneg %p93
    $region19: #{tpu_custom_call.1} parent=1 // pred_check_branch
      %96 = sbr.rel (%p94) target = $region21
    $region20: #{tpu_custom_call.1} parent=1 // pred_region
      %v97 = vlaneseq
      %v98 = vshrl.u32 %v97, 7
      %v99 = vadd.s32 %v98, 8
      %v100 = vstv %s92
      %v101 = vadd.s32 %v98, %v100
      %v102 = vadd.s32 %v99, %v100
      %v103 = vlaneseq
      %v104 = vand.u32 %v103, 127
      %vm105 = vcmp.eq.s32.totalorder %v101, %v104
      %vm106 = vcmp.eq.s32.totalorder %v102, %v104
      %v107 = vsel %vm105, 0.25, 1.0
      %v108 = vsel %vm106, 0.25, 1.0
      %v109 = vmul.f32 %v107, %v90
      %v110 = vmul.f32 %v108, %v91
      %v111 = vsub.f32 0.0, %v109
      %v112 = vsub.f32 0.0, %v110
      %113 = vst [vmem:[#allocation7] sm:$0xff] %v111
      %114 = vst [vmem:[#allocation7 + $0x8] sm:$0xff] %v112
    $region21: #{tpu_custom_call.1} parent=1 // pred_fallthru
      _
    %p115 = scmp.ge.s32.totalorder %s92, 128
    // Predicated region
    $region22: #{tpu_custom_call.1} parent=1 // pred_check
      %p116 = pneg %p115
    $region23: #{tpu_custom_call.1} parent=1 // pred_check_branch
      %118 = sbr.rel (%p116) target = $region25
    $region24: #{tpu_custom_call.1} parent=1 // pred_region
      %v119 = vsub.f32 0.0, %v90
      %v120 = vsub.f32 0.0, %v91
      %121 = vst [vmem:[#allocation7] sm:$0xff] %v119
      %122 = vst [vmem:[#allocation7 + $0x8] sm:$0xff] %v120
    $region25: #{tpu_custom_call.1} parent=1 // pred_fallthru
      _
    // Predicated region
    $region26: #{tpu_custom_call.1} parent=1 // pred_check
      _
    $region27: #{tpu_custom_call.1} parent=1 // pred_check_branch
      %124 = sbr.rel (0) target = $region29
    $region28: #{tpu_custom_call.1} parent=1 // pred_region
      %s126 = ssub.s32 256, 256
      %127 = vsyncadd [#allocation4], %s126
      %s128 = sshll.u32 [#allocation7], 4
      %s129 = int_to_ptr.vmem [resolvable:$true] %s128
      %134 = dma.vmem_to_hbm [thread:$0]  %s129, 256, %s2, [#allocation4], 128, 128, 8
    $region29: #{tpu_custom_call.1} parent=1 // pred_fallthru
      _
    // Predicated region
    $region30: #{tpu_custom_call.1} parent=1 // pred_check
      _
    $region31: #{tpu_custom_call.1} parent=1 // pred_check_branch
      %136 = sbr.rel (0) target = $region33
    $region32: #{tpu_custom_call.1} parent=1 // pred_region
      %137 = dma.done [#allocation4], 256
    $region33: #{tpu_custom_call.1} parent=1 // pred_fallthru
      _
    %138 = vsyncpa [#allocation3], 1
    %139 = vsyncpa [#allocation6], 1
    %140 = vsyncpa [#allocation4], 1

</llo_original>
